<compile_context>
chip_gen: v6e
topology: v6e:2x2x1
jax: 0.10.0
libtpu: 0.0.40
codegen_flags: <defaults>
</compile_context>

<pallas_src>
import functools
import math

import jax
import jax.numpy as jnp
from jax.experimental import pallas as pl
from jax.experimental.pallas import tpu as pltpu


# Raise v5e's 16 MiB scoped-VMEM default; still well under v7x's 64 MiB physical.
_VMEM_LIMIT_BYTES = 32 * 1024 * 1024


# ---------------------------------------------------------------------------
# Tile-size helper
# ---------------------------------------------------------------------------
def _pick_tile(length, *, max_tile, multiple):
    """Largest legal tile: the full axis if it fits max_tile, else the biggest
    power-of-two divisor that is a multiple of `multiple`, else the full axis
    (a full-extent block is always legal regardless of alignment)."""
    if length <= max_tile:
        return length
    for t in (1024, 512, 256, 128, 64, 32, 16, 8):
        if t <= max_tile and t % multiple == 0 and length % t == 0:
            return t
    return length


# ---------------------------------------------------------------------------
# Kernel 1: pointwise (1x1) Conv1d  ==  (T, Cin) @ (Cin, Cout) + bias
#           (optionally several weight/bias pairs sharing the same input)
# ---------------------------------------------------------------------------
def _pointwise_conv_kernel(*refs, n_out):
    x_ref = refs[0]
    w_refs = refs[1:1 + n_out]
    b_refs = refs[1 + n_out:1 + 2 * n_out]
    o_refs = refs[1 + 2 * n_out:]
    x = x_ref[0]                                            # (TT, Cin) bf16
    for w_ref, b_ref, o_ref in zip(w_refs, b_refs, o_refs):
        y = jnp.dot(x, w_ref[...], preferred_element_type=jnp.float32)
        o_ref[0] = (y + b_ref[...]).astype(o_ref.dtype)


def pointwise_conv(x_ntc, weights, biases, out_dtypes):
    """x_ntc: (N, T, Cin) bf16; weights[i]: (Cin, Cout_i) bf16;
    biases[i]: (Cout_i,) f32.  Returns a tuple of (N, T, Cout_i) arrays."""
    N, T, Cin = x_ntc.shape
    n_out = len(weights)
    TT = _pick_tile(T, max_tile=1024, multiple=16)
    grid = (N, T // TT)

    biases2d = [jnp.asarray(b, jnp.float32).reshape(1, -1) for b in biases]

    in_specs = [pl.BlockSpec((1, TT, Cin), lambda n, t: (n, t, 0))]
    for w in weights:
        cout = w.shape[1]
        in_specs.append(pl.BlockSpec((Cin, cout), lambda n, t: (0, 0)))
    for b2 in biases2d:
        cout = b2.shape[1]
        in_specs.append(pl.BlockSpec((1, cout), lambda n, t: (0, 0)))

    out_specs = tuple(
        pl.BlockSpec((1, TT, w.shape[1]), lambda n, t: (n, t, 0))
        for w in weights)
    out_shape = tuple(
        jax.ShapeDtypeStruct((N, T, w.shape[1]), dt)
        for w, dt in zip(weights, out_dtypes))

    return pl.pallas_call(
        functools.partial(_pointwise_conv_kernel, n_out=n_out),
        out_shape=out_shape,
        grid_spec=pltpu.PrefetchScalarGridSpec(
            num_scalar_prefetch=0,
            grid=grid,
            in_specs=in_specs,
            out_specs=out_specs),
        compiler_params=pltpu.CompilerParams(
            dimension_semantics=("parallel", "parallel"),
            vmem_limit_bytes=_VMEM_LIMIT_BYTES),
    )(x_ntc, *weights, *biases2d)


# ---------------------------------------------------------------------------
# Kernel 2: flash-style attention in (N, T, C) layout, all heads per step
# ---------------------------------------------------------------------------
def _mha_attn_kernel(*refs, n_heads, d_head, has_mask):
    if has_mask:
        q_ref, k_ref, v_ref, mask_ref, o_ref, m_sc, l_sc, acc_sc = refs
    else:
        q_ref, k_ref, v_ref, o_ref, m_sc, l_sc, acc_sc = refs

    ki = pl.program_id(2)

    @pl.when(ki == 0)
    def _():
        m_sc[...] = jnp.full_like(m_sc, -jnp.inf)
        l_sc[...] = jnp.zeros_like(l_sc)
        acc_sc[...] = jnp.zeros_like(acc_sc)

    q = q_ref[0]          # (TQ, C) bf16, already scaled by 1/sqrt(Dh)
    k = k_ref[0]          # (TK, C) bf16
    v = v_ref[0]          # (TK, C) bf16

    if has_mask:
        # int8 mask, fetched once per (b, qi, ki) tile and shared by all heads.
        keep = mask_ref[0].astype(jnp.float32) > 0.0       # (TQ, TK) bool

    for h in range(n_heads):                               # static, unrolled
        lo = h * d_head
        hi = lo + d_head
        qh = q[:, lo:hi]                                   # (TQ, Dh) bf16
        kh = k[:, lo:hi]                                   # (TK, Dh) bf16
        vh = v[:, lo:hi]                                   # (TK, Dh) bf16

        # scores = q_scaled @ k^T   (bf16 MXU, f32 accumulation)
        s = jax.lax.dot_general(qh, kh, (((1,), (1,)), ((), ())),
                                preferred_element_type=jnp.float32)
        if has_mask:
            # torch: scores.masked_fill(mask == 0, -1e4)
            s = jnp.where(keep, s, jnp.float32(-10000.0))

        m_prev = m_sc[h]                                   # (TQ, 1)
        m_new = jnp.maximum(m_prev, s.max(axis=-1, keepdims=True))
        alpha = jnp.exp(m_prev - m_new)
        p = jnp.exp(s - m_new)                             # (TQ, TK) f32
        l_sc[h] = alpha * l_sc[h] + p.sum(axis=-1, keepdims=True)
        pv = jnp.dot(p.astype(jnp.bfloat16), vh,
                     preferred_element_type=jnp.float32)   # (TQ, Dh) f32
        acc_sc[:, pl.ds(lo, d_head)] = (
            alpha * acc_sc[:, pl.ds(lo, d_head)] + pv)
        m_sc[h] = m_new

    @pl.when(ki == pl.num_programs(2) - 1)
    def _():
        for h in range(n_heads):
            lo = h * d_head
            inv = pl.reciprocal(l_sc[h], approx=True)      # EUP reciprocal
            acc_sc[:, pl.ds(lo, d_head)] = acc_sc[:, pl.ds(lo, d_head)] * inv
        o_ref[0] = acc_sc[...].astype(o_ref.dtype)         # lane-dense store


def flash_attention(q_ntc, k_nsc, v_nsc, *, n_heads, mask_bts=None):
    """q: (N, T, C) bf16, k/v: (N, S, C) bf16, mask: (N, T, S) int8 or None.
    Returns (N, T, C) bf16 with queries pre-scaled by 1/sqrt(Dh)."""
    N, T, C = q_ntc.shape
    S = k_nsc.shape[1]
    Dh = C // n_heads
    has_mask = mask_bts is not None

    TQ = _pick_tile(T, max_tile=512, multiple=32 if has_mask else 16)
    TK = _pick_tile(S, max_tile=512, multiple=128 if has_mask else 16)
    grid = (N, T // TQ, S // TK)

    in_specs = [
        pl.BlockSpec((1, TQ, C), lambda b, qi, ki: (b, qi, 0)),
        pl.BlockSpec((1, TK, C), lambda b, qi, ki: (b, ki, 0)),
        pl.BlockSpec((1, TK, C), lambda b, qi, ki: (b, ki, 0)),
    ]
    args = [q_ntc, k_nsc, v_nsc]
    if has_mask:
        in_specs.append(
            pl.BlockSpec((1, TQ, TK), lambda b, qi, ki: (b, qi, ki)))
        args.append(mask_bts)

    kernel = functools.partial(_mha_attn_kernel, n_heads=n_heads, d_head=Dh,
                               has_mask=has_mask)
    return pl.pallas_call(
        kernel,
        out_shape=jax.ShapeDtypeStruct((N, T, C), jnp.bfloat16),
        grid_spec=pltpu.PrefetchScalarGridSpec(
            num_scalar_prefetch=0,
            grid=grid,
            in_specs=in_specs,
            out_specs=pl.BlockSpec((1, TQ, C), lambda b, qi, ki: (b, qi, 0)),
            scratch_shapes=[
                pltpu.VMEM((n_heads, TQ, 1), jnp.float32),  # running max m
                pltpu.VMEM((n_heads, TQ, 1), jnp.float32),  # running denom l
                pltpu.VMEM((TQ, C), jnp.float32),           # output accumulator
            ],
        ),
        compiler_params=pltpu.CompilerParams(
            dimension_semantics=("parallel", "parallel", "arbitrary"),
            vmem_limit_bytes=_VMEM_LIMIT_BYTES),
    )(*args)


# ---------------------------------------------------------------------------
# MultiHeadAttention.forward wrapper
# ---------------------------------------------------------------------------
def multi_head_attention_forward(x_nct, c_nct, params, *, n_heads,
                                 attn_mask=None):
    """Equivalent of MultiHeadAttention.forward (default config):
       x_nct: (N, channels, t_t)   query-side input
       c_nct: (N, channels, t_s)   key/value-side input
       attn_mask: optional (N, 1, t_t, t_s) or (N, t_t, t_s); 0 -> masked
       returns (N, out_channels, t_t)."""
    N, C, T = x_nct.shape
    S = c_nct.shape[2]
    H = n_heads
    assert C % H == 0
    Dh = C // H
    scale = 1.0 / math.sqrt(Dh)

    # PyTorch Conv1d weight (Cout, Cin, 1) -> (Cin, Cout) matmul layout, bf16
    # for the MXU.  The 1/sqrt(Dh) scale is folded into the Q projection.
    def prep_w(w, s=1.0):
        return (jnp.transpose(w[:, :, 0], (1, 0)) * s).astype(jnp.bfloat16)

    w_q = prep_w(params["w_q"], scale)
    w_k = prep_w(params["w_k"])
    w_v = prep_w(params["w_v"])
    w_o = prep_w(params["w_o"])
    b_q = params["b_q"] * scale
    b_k, b_v, b_o = params["b_k"], params["b_v"], params["b_o"]

    # NCT -> NTC so channels sit on the lane axis; bf16 halves conv input DMA.
    x_ntc = jnp.transpose(x_nct, (0, 2, 1)).astype(jnp.bfloat16)
    c_ntc = jnp.transpose(c_nct, (0, 2, 1)).astype(jnp.bfloat16)

    # Q projection; K and V projections share one kernel call (c read from HBM
    # once) with two dense outputs (no strided half-width slices downstream).
    (q_ntc,) = pointwise_conv(x_ntc, [w_q], [b_q], [jnp.bfloat16])
    k_ntc, v_ntc = pointwise_conv(c_ntc, [w_k, w_v], [b_k, b_v],
                                  [jnp.bfloat16, jnp.bfloat16])

    mask_bts = None
    if attn_mask is not None:
        m = attn_mask
        if m.ndim == 4:                                    # (N, 1, T, S)
            assert m.shape[1] == 1, "per-head attention masks not supported"
            m = m[:, 0]
        mask_bts = (m != 0).astype(jnp.int8)               # 4x smaller mask DMA

    # Attention stays in (N, T, C) layout end-to-end: no head split/merge HBM
    # transposes, lane-dense output stores, mask amortized over all heads.
    o_ntc = flash_attention(q_ntc, k_ntc, v_ntc, n_heads=H, mask_bts=mask_bts)

    (out_ntc,) = pointwise_conv(o_ntc, [w_o], [b_o], [jnp.float32])
    return jnp.transpose(out_ntc, (0, 2, 1))               # (N, out_channels, T)


# ---------------------------------------------------------------------------
# Parameter init (matches PyTorch layouts; xavier_uniform for q/k/v weights)
# ---------------------------------------------------------------------------
def _init_mha_params(key, channels, out_channels):
    ks = jax.random.split(key, 8)

    def xavier(k, cout, cin):
        a = math.sqrt(6.0 / (cin + cout))
        return jax.random.uniform(k, (cout, cin, 1), minval=-a, maxval=a,
                                  dtype=jnp.float32)

    def bias(k, cout, cin):
        bound = 1.0 / math.sqrt(cin)
        return jax.random.uniform(k, (cout,), minval=-bound, maxval=bound,
                                  dtype=jnp.float32)

    return {
        "w_q": xavier(ks[0], channels, channels),
        "b_q": bias(ks[1], channels, channels),
        "w_k": xavier(ks[2], channels, channels),
        "b_k": bias(ks[3], channels, channels),
        "w_v": xavier(ks[4], channels, channels),
        "b_v": bias(ks[5], channels, channels),
        "w_o": xavier(ks[6], out_channels, channels),
        "b_o": bias(ks[7], out_channels, channels),
    }


# ---------------------------------------------------------------------------
# Pure-JAX (float32) reference mirroring the PyTorch default code path
# ---------------------------------------------------------------------------
def _reference_mha(x_nct, c_nct, params, n_heads, attn_mask=None):
    def conv1x1(x, w, b):
        return jnp.einsum("nct,oc->not", x, w[:, :, 0]) + b[None, :, None]

    q = conv1x1(x_nct, params["w_q"], params["b_q"])
    k = conv1x1(c_nct, params["w_k"], params["b_k"])
    v = conv1x1(c_nct, params["w_v"], params["b_v"])
    N, C, T = q.shape
    S = k.shape[2]
    H = n_heads
    Dh = C // H
    qh = q.reshape(N, H, Dh, T).transpose(0, 1, 3, 2)
    kh = k.reshape(N, H, Dh, S).transpose(0, 1, 3, 2)
    vh = v.reshape(N, H, Dh, S).transpose(0, 1, 3, 2)
    scores = jnp.einsum("bhtd,bhsd->bhts", qh, kh) / math.sqrt(Dh)
    if attn_mask is not None:
        m = attn_mask if attn_mask.ndim == 4 else attn_mask[:, None]
        scores = jnp.where(m == 0, -10000.0, scores)
    p = jax.nn.softmax(scores, axis=-1)
    o = jnp.einsum("bhts,bhsd->bhtd", p, vh)
    o = o.transpose(0, 1, 3, 2).reshape(N, C, T)
    return conv1x1(o, params["w_o"], params["b_o"])


if __name__ == "__main__":
    key = jax.random.PRNGKey(0)
    k_x, k_c, k_m, k_p = jax.random.split(key, 4)

    # Small shapes consistent with MultiHeadAttention: channels % n_heads == 0.
    N, channels, out_channels, n_heads = 2, 64, 32, 4
    t_t, t_s = 16, 24

    x = jax.random.normal(k_x, (N, channels, t_t), dtype=jnp.float32)
    c = jax.random.normal(k_c, (N, channels, t_s), dtype=jnp.float32)
    attn_mask = (jax.random.uniform(k_m, (N, 1, t_t, t_s)) > 0.3
                 ).astype(jnp.float32)
    params = _init_mha_params(k_p, channels, out_channels)

    # Masked (cross-attention) path.  bf16 MXU inputs -> expect ~1e-2 level
    # deviation vs the pure-f32 reference; threshold chosen with margin.
    out = multi_head_attention_forward(x, c, params, n_heads=n_heads,
                                       attn_mask=attn_mask)
    out = jax.block_until_ready(out)
    ref = _reference_mha(x, c, params, n_heads, attn_mask)
    assert out.shape == (N, out_channels, t_t), out.shape
    err = float(jnp.max(jnp.abs(out - ref)))
    assert err < 1e-1, f"mismatch (masked): max abs err {err}"

    # mask=None path (compiles a no-mask kernel variant).
    out_nm = multi_head_attention_forward(x, c, params, n_heads=n_heads,
                                          attn_mask=None)
    out_nm = jax.block_until_ready(out_nm)
    ref_nm = _reference_mha(x, c, params, n_heads, None)
    err_nm = float(jnp.max(jnp.abs(out_nm - ref_nm)))
    assert err_nm < 1e-1, f"mismatch (no mask): max abs err {err_nm}"

    print("KERNEL_OK")
</pallas_src>

<mosaic_0001>
module attributes {stable_mosaic.version = 11 : i64} {
  func.func @_pointwise_conv_kernel(%arg0: i32, %arg1: i32, %arg2: memref<1x16x64xbf16, #tpu.memory_space<vmem>>, %arg3: memref<64x64xbf16, #tpu.memory_space<vmem>>, %arg4: memref<1x64xf32, #tpu.memory_space<vmem>>, %arg5: memref<1x16x64xbf16, #tpu.memory_space<vmem>>) attributes {dimension_semantics = [#tpu.dimension_semantics<parallel>, #tpu.dimension_semantics<parallel>], iteration_bounds = array<i64: 2, 1>, scalar_prefetch = 0 : i64, scratch_operands = 0 : i64, tpu.core_type = #tpu.core_type<tc>, window_params = [{transform_indices = @transform_0, window_bounds = array<i64: 1, 16, 64>}, {pipeline_mode = #tpu.pipeline_mode<synchronous>, transform_indices = @transform_1, window_bounds = array<i64: 64, 64>}, {pipeline_mode = #tpu.pipeline_mode<synchronous>, transform_indices = @transform_2, window_bounds = array<i64: 1, 64>}, {transform_indices = @transform_3, window_bounds = array<i64: 1, 16, 64>}]} {
    %c0 = arith.constant 0 : index
    %c0_0 = arith.constant 0 : index
    %c0_1 = arith.constant 0 : index
    %0 = vector.load %arg2[%c0, %c0_0, %c0_1] : memref<1x16x64xbf16, #tpu.memory_space<vmem>>, vector<1x16x64xbf16>
    %1 = vector.shape_cast %0 : vector<1x16x64xbf16> to vector<16x64xbf16>
    %c0_2 = arith.constant 0 : index
    %c0_3 = arith.constant 0 : index
    %2 = vector.load %arg3[%c0_2, %c0_3] : memref<64x64xbf16, #tpu.memory_space<vmem>>, vector<64x64xbf16>
    %cst = arith.constant dense<0.000000e+00> : vector<16x64xf32>
    %3 = tpu.matmul %1, %2, %cst {dimension_numbers = #tpu.dot_dimension_numbers<[1], [0], [0], [1], [0, 0, 1, 1], [], []>} : vector<16x64xbf16>, vector<64x64xbf16>, vector<16x64xf32> -> vector<16x64xf32>
    %c0_4 = arith.constant 0 : index
    %c0_5 = arith.constant 0 : index
    %4 = vector.load %arg4[%c0_4, %c0_5] : memref<1x64xf32, #tpu.memory_space<vmem>>, vector<1x64xf32>
    %5 = vector.broadcast %4 : vector<1x64xf32> to vector<16x64xf32>
    %6 = arith.addf %3, %5 : vector<16x64xf32>
    %7 = arith.truncf %6 : vector<16x64xf32> to vector<16x64xbf16>
    %c0_6 = arith.constant 0 : index
    %c0_7 = arith.constant 0 : index
    %c0_8 = arith.constant 0 : index
    %8 = vector.load %arg5[%c0_6, %c0_7, %c0_8] : memref<1x16x64xbf16, #tpu.memory_space<vmem>>, vector<1x16x64xbf16>
    %9 = vector.shape_cast %8 : vector<1x16x64xbf16> to vector<16x64xbf16>
    %10 = vector.shape_cast %7 : vector<16x64xbf16> to vector<1x16x64xbf16>
    tpu.vector_store %arg5[%c0_6, %c0_7, %c0_8], %10 {strides = array<i32>} : memref<1x16x64xbf16, #tpu.memory_space<vmem>>, vector<1x16x64xbf16>,
    return
  }
  func.func @transform_0(%arg0: i32, %arg1: i32) -> (i32, i32, i32) {
    %c0_i32 = arith.constant 0 : i32
    %c0_i32_0 = arith.constant 0 : i32
    return %arg0, %arg1, %c0_i32 : i32, i32, i32
  }
  func.func @transform_1(%arg0: i32, %arg1: i32) -> (i32, i32) {
    %c0_i32 = arith.constant 0 : i32
    %c0_i32_0 = arith.constant 0 : i32
    %c0_i32_1 = arith.constant 0 : i32
    return %c0_i32, %c0_i32_0 : i32, i32
  }
  func.func @transform_2(%arg0: i32, %arg1: i32) -> (i32, i32) {
    %c0_i32 = arith.constant 0 : i32
    %c0_i32_0 = arith.constant 0 : i32
    %c0_i32_1 = arith.constant 0 : i32
    return %c0_i32, %c0_i32_0 : i32, i32
  }
  func.func @transform_3(%arg0: i32, %arg1: i32) -> (i32, i32, i32) {
    %c0_i32 = arith.constant 0 : i32
    %c0_i32_0 = arith.constant 0 : i32
    return %arg0, %arg1, %c0_i32 : i32, i32, i32
  }
}

</mosaic_0001>

<llo_original>
// kernel: tpu_custom_call.1
$region0: #{tpu_custom_call.1}
  #allocation0 [shape = 'u32[]', space=smem, size = 0x4, offset = 0x4, fixed_abs, tag = 'smem constant byte address 0x4 - core index']
  #allocation1 [shape = 'u32[144,128]{1,0:T(1,128)}', space=vmem, size = 0x12000, scoped, tag = 'internal scratch']
  %s0 = inlined_call_operand.hbm [shape: bf16[2,16,64], index: 0, kind: input, shape index: {}]
  %s1 = inlined_call_operand.hbm [shape: bf16[64,64], index: 1, kind: input, shape index: {}]
  %s2 = inlined_call_operand.vmem [shape: f32[1,64], index: 2, kind: input, shape index: {}]
  %s3 = inlined_call_operand.hbm [shape: bf16[2,16,64], index: 3, kind: output, shape index: {}]
  %s4 = sld [smem:[#allocation0]]
  $region53: #{tpu_custom_call.1} parent=0
    _
  %s6 = ssub.s32 1, %s4
  %s7 = scalar_select 0, %s6, %s4
  $region1: #{tpu_custom_call.1} parent=0
    #allocation2 [shape = 'u8[8192]{0}', space=vmem, size = 0x2000, scoped, tag = 'input window, operand 0']
    #allocation3 [shape = 's32[2]{0}', space=sflag, size = 0x8, scoped, tag = 'scoped memory for tpu_custom_call.1']
    #allocation4 [shape = 's32[2]{0}', space=sflag, size = 0x8, scoped, tag = 'scoped memory for tpu_custom_call.1']
    #allocation5 [shape = 'u8[16384]{0}', space=vmem, size = 0x4000, scoped, tag = 'input window, operand 1, single buffered']
    #allocation6 [shape = 's32[1]{0}', space=sflag, size = 0x4, scoped, tag = 'scoped memory for tpu_custom_call.1']
    #allocation7 [shape = 'u8[8192]{0}', space=vmem, size = 0x2000, scoped, tag = 'output window, operand 0']
    %8 = vsyncpa [#allocation3], 0
    %s9 = scalar_lea.sflag [#allocation3], 1
    %10 = vsyncpa %s9, 0
    %11 = vsyncpa [#allocation6], 0
    %12 = vsyncpa [#allocation4], 0
    %s13 = scalar_lea.sflag [#allocation4], 1
    %14 = vsyncpa %s13, 0
    loop: start=0, step=1, limit=4
    $region2: #{tpu_custom_call.1} parent=1 // loop_pre_header
      _
    $region3: #{tpu_custom_call.1} parent=1 // loop_header
      %s16 = sphi 0, %s20
      %p17 = scmp.ge.s32.totalorder %s16, 4
      %s23 = sphi 0, %s35
      %s24 = sphi 0, %s31
      %s25 = sphi 0, %s23
      %s26 = sphi 0, %s24
      %s27 = sphi 0, %s25
      %s28 = sphi 0, %s26
      %s40 = sphi 0, %s42
      %s43 = sphi 0, %s40
      %s44 = sphi 0, %s43
      %s60 = sphi 0, %s44
      %s64 = sphi 0, %s64
      %s66 = sphi 0, %s64
      %s67 = sphi 0, %s66
      %s81 = sphi 0, %s67
      %s85 = sphi 0, %s85
      %s87 = sphi 0, %s85
      %s88 = sphi 0, %s87
      %s102 = sphi 0, %s88
      %s110 = sphi 0, %s112
      %s113 = sphi 0, %s110
      %s114 = sphi 0, %s113
      %s130 = sphi 0, %s114
    $region4: #{tpu_custom_call.1} parent=1 // loop_header_branch
      %19 = sbr.rel (%p17) target = $region8
    $region5: #{tpu_custom_call.1} parent=1 // loop_body
      %s21 = ssub.s32 %s16, 1
      %s22 = ssub.s32 %s16, 2
      %s29 = sadd.s32 1, %s24
      %p30 = scmp.ge.s32.totalorder %s29, 1
      %s31 = scalar_select %p30, 0, %s29
      %s32 = sadd.s32 1, %s23
      %s33 = scalar_select %p30, %s32, %s23
      %p34 = scmp.ge.s32.totalorder %s33, 2
      %s35 = scalar_select %p34, 0, %s33
      %s36 = ssub.s32 %s23, %s35
      %s37 = ssub.s32 %s24, %s31
      %s38 = sor.u32 %s36, %s37
      %p39 = scmp.eq.s32.totalorder %s38, 0
      %s41 = sadd.s32 %s40, 1
      %s42 = scalar_select %p39, %s40, %s41
      %p45 = pneg %p39
      %p46 = scmp.eq.s32.totalorder %s16, 1
      %p47 = por %p45, %p46
      %p48 = scmp.ne.s32.totalorder %s40, %s43
      %p49 = scmp.eq.s32.totalorder %s16, 0
      %p50 = por %p48, %p49
      %p51 = scmp.ne.s32.totalorder %s40, %s43
      %p52 = scmp.eq.s32.totalorder %s21, 1
      %p53 = por %p51, %p52
      %p54 = scmp.ne.s32.totalorder %s43, %s44
      %p55 = scmp.eq.s32.totalorder %s21, 0
      %p56 = por %p54, %p55
      %p57 = scmp.ne.s32.totalorder %s43, %s44
      %p58 = scmp.eq.s32.totalorder %s22, 1
      %p59 = por %p57, %p58
      %p61 = scmp.ne.s32.totalorder %s44, %s60
      %p62 = scmp.eq.s32.totalorder %s22, 0
      %p63 = por %p61, %p62
      %s65 = sadd.s32 %s64, 1
      %p68 = scmp.eq.s32.totalorder %s16, 1
      %p69 = scmp.ne.s32.totalorder %s64, %s66
      %p70 = scmp.eq.s32.totalorder %s16, 0
      %p71 = por %p69, %p70
      %p72 = scmp.ne.s32.totalorder %s64, %s66
      %p73 = scmp.eq.s32.totalorder %s21, 1
      %p74 = por %p72, %p73
      %p75 = scmp.ne.s32.totalorder %s66, %s67
      %p76 = scmp.eq.s32.totalorder %s21, 0
      %p77 = por %p75, %p76
      %p78 = scmp.ne.s32.totalorder %s66, %s67
      %p79 = scmp.eq.s32.totalorder %s22, 1
      %p80 = por %p78, %p79
      %p82 = scmp.ne.s32.totalorder %s67, %s81
      %p83 = scmp.eq.s32.totalorder %s22, 0
      %p84 = por %p82, %p83
      %s86 = sadd.s32 %s85, 1
      %p89 = scmp.eq.s32.totalorder %s16, 1
      %p90 = scmp.ne.s32.totalorder %s85, %s87
      %p91 = scmp.eq.s32.totalorder %s16, 0
      %p92 = por %p90, %p91
      %p93 = scmp.ne.s32.totalorder %s85, %s87
      %p94 = scmp.eq.s32.totalorder %s21, 1
      %p95 = por %p93, %p94
      %p96 = scmp.ne.s32.totalorder %s87, %s88
      %p97 = scmp.eq.s32.totalorder %s21, 0
      %p98 = por %p96, %p97
      %p99 = scmp.ne.s32.totalorder %s87, %s88
      %p100 = scmp.eq.s32.totalorder %s22, 1
      %p101 = por %p99, %p100
      %p103 = scmp.ne.s32.totalorder %s88, %s102
      %p104 = scmp.eq.s32.totalorder %s22, 0
      %p105 = por %p103, %p104
      %s106 = ssub.s32 %s23, %s35
      %s107 = ssub.s32 %s24, %s31
      %s108 = sor.u32 %s106, %s107
      %p109 = scmp.eq.s32.totalorder %s108, 0
      %s111 = sadd.s32 %s110, 1
      %s112 = scalar_select %p109, %s110, %s111
      %p115 = pneg %p109
      %p116 = scmp.eq.s32.totalorder %s16, 1
      %p117 = por %p115, %p116
      %p118 = scmp.ne.s32.totalorder %s110, %s113
      %p119 = scmp.eq.s32.totalorder %s16, 0
      %p120 = por %p118, %p119
      %p121 = scmp.ne.s32.totalorder %s110, %s113
      %p122 = scmp.eq.s32.totalorder %s21, 1
      %p123 = por %p121, %p122
      %p124 = scmp.ne.s32.totalorder %s113, %s114
      %p125 = scmp.eq.s32.totalorder %s21, 0
      %p126 = por %p124, %p125
      %p127 = scmp.ne.s32.totalorder %s113, %s114
      %p128 = scmp.eq.s32.totalorder %s22, 1
      %p129 = por %p127, %p128
      %p131 = scmp.ne.s32.totalorder %s114, %s130
      %p132 = scmp.eq.s32.totalorder %s22, 0
      %p133 = por %p131, %p132
      %p134 = scmp.le.s32.totalorder 1, %s16
      %p135 = scmp.lt.s32.totalorder %s16, 3
      %p136 = pnand %p134, %p135
      %p137 = pneg %p136
      // Predicated region
      $region9: #{tpu_custom_call.1} parent=5 // pred_check
        _
      $region10: #{tpu_custom_call.1} parent=5 // pred_check_branch
        %139 = sbr.rel (%p136) target = $region12
      $region11: #{tpu_custom_call.1} parent=5 // pred_region
        %s140 = ssub.s32 %s16, 1
        // Predicated region
        $region13: #{tpu_custom_call.1} parent=11 // pred_check
          %p141 = pneg %p77
        $region14: #{tpu_custom_call.1} parent=11 // pred_check_branch
          %143 = sbr.rel (%p141) target = $region16
        $region15: #{tpu_custom_call.1} parent=11 // pred_region
          %s145 = ssub.s32 512, 512
          %146 = vsyncadd [#allocation6], %s145
          %s147 = sshll.u32 [#allocation5], 4
          %s148 = int_to_ptr.vmem [resolvable:$true] %s147
          %153 = dma.hbm_to_vmem [thread:$0]  %s1, 512, %s148, [#allocation6], 64, 64, 4
        $region16: #{tpu_custom_call.1} parent=11 // pred_fallthru
          _
        // Predicated region
        $region17: #{tpu_custom_call.1} parent=11 // pred_check
          %p154 = pneg %p98
        $region18: #{tpu_custom_call.1} parent=11 // pred_check_branch
          %156 = sbr.rel (%p154) target = $region20
        $region19: #{tpu_custom_call.1} parent=11 // pred_region
          _
        $region20: #{tpu_custom_call.1} parent=11 // pred_fallthru
          _
      $region12: #{tpu_custom_call.1} parent=5 // pred_fallthru
        _
      %p157 = scmp.lt.s32.totalorder %s16, 2
      // Predicated region
      $region21: #{tpu_custom_call.1} parent=5 // pred_check
        %p158 = pneg %p157
      $region22: #{tpu_custom_call.1} parent=5 // pred_check_branch
        %160 = sbr.rel (%p158) target = $region24
      $region23: #{tpu_custom_call.1} parent=5 // pred_region
        // Predicated region
        $region25: #{tpu_custom_call.1} parent=23 // pred_check
          %p161 = pneg %p50
        $region26: #{tpu_custom_call.1} parent=23 // pred_check_branch
          %163 = sbr.rel (%p161) target = $region28
        $region27: #{tpu_custom_call.1} parent=23 // pred_region
          %s164 = sand.u32 %s40, 1
          %s165 = scalar_lea.sflag [#allocation3], %s164
          %s166 = sand.u32 %s40, 1
          %s167 = smul.addr %s166, 8
          %s168 = scalar_lea.vmem [#allocation2], %s167
          %s169 = smul.u32 2, %s24
          %s171 = ssub.s32 128, 128
          %172 = vsyncadd %s165, %s171
          %s173 = smul.addr %s23, 2
          %s174 = sadd.s32 %s169, %s173
          %s175 = smul.addr %s174, 64
          %s176 = scalar_lea.hbm %s0, %s175
          %s177 = sshll.u32 %s168, 4
          %s178 = int_to_ptr.vmem [resolvable:$true] %s177
          %183 = dma.hbm_to_vmem [thread:$0]  %s176, 128, %s178, %s165, 64, 64, 4
        $region28: #{tpu_custom_call.1} parent=23 // pred_fallthru
          _
      $region24: #{tpu_custom_call.1} parent=5 // pred_fallthru
        _
      %p184 = scmp.le.s32.totalorder 1, %s16
      %p185 = scmp.lt.s32.totalorder %s16, 3
      %p186 = pnand %p184, %p185
      %p187 = pneg %p186
      // Predicated region
      $region29: #{tpu_custom_call.1} parent=5 // pred_check
        _
      $region30: #{tpu_custom_call.1} parent=5 // pred_check_branch
        %189 = sbr.rel (%p186) target = $region32
      $region31: #{tpu_custom_call.1} parent=5 // pred_region
        %s190 = ssub.s32 %s16, 1
        %s191 = sand.u32 %s43, 1
        %s192 = scalar_lea.sflag [#allocation3], %s191
        %s193 = sand.u32 %s43, 1
        %s194 = smul.addr %s193, 8
        %s195 = scalar_lea.vmem [#allocation2], %s194
        // Predicated region
        $region33: #{tpu_custom_call.1} parent=31 // pred_check
          %p196 = pneg %p56
        $region34: #{tpu_custom_call.1} parent=31 // pred_check_branch
          %198 = sbr.rel (%p196) target = $region36
        $region35: #{tpu_custom_call.1} parent=31 // pred_region
          %199 = dma.done %s192, 128
        $region36: #{tpu_custom_call.1} parent=31 // pred_fallthru
          _
        // Predicated region
        $region37: #{tpu_custom_call.1} parent=31 // pred_check
          %p200 = pneg %p77
        $region38: #{tpu_custom_call.1} parent=31 // pred_check_branch
          %202 = sbr.rel (%p200) target = $region40
        $region39: #{tpu_custom_call.1} parent=31 // pred_region
          %203 = dma.done [#allocation6], 512
        $region40: #{tpu_custom_call.1} parent=31 // pred_fallthru
          _
        %s204 = sand.u32 %s43, 1
        %s205 = scalar_lea.sflag [#allocation3], %s204
        %s206 = sand.u32 %s43, 1
        %s207 = smul.addr %s206, 8
        %s208 = scalar_lea.vmem [#allocation2], %s207
        %p209 = pneg %p56
        %p210 = pneg %p53
        %p211 = pneg %p77
        %p212 = pneg %p74
        %p213 = pneg %p98
        %p214 = pneg %p95
        %p215 = pneg %p126
        %p216 = pneg %p123
        %s217 = sand.u32 %s113, 1
        %s218 = scalar_lea.sflag [#allocation4], %s217
        %s219 = sand.u32 %s113, 1
        %s220 = smul.addr %s219, 8
        %s221 = scalar_lea.vmem [#allocation7], %s220
        %s222 = smul.u32 2, %s26
        %s223 = smul.u32 2, %s26
        %v225 = vld [vmem:[%s195] sm:$0xf]
        %v226 = vld [vmem:[%s195 + $0x4] sm:$0xf]
        %v227 = vld [vmem:[#allocation5] sm:$0xf]
        %v228 = vld [vmem:[#allocation5 + $0x4] sm:$0xf]
        %v229 = vld [vmem:[#allocation5 + $0x8] sm:$0xf]
        %v230 = vld [vmem:[#allocation5 + $0xc] sm:$0xf]
        %v231 = vld [vmem:[#allocation5 + $0x10] sm:$0xf]
        %v232 = vld [vmem:[#allocation5 + $0x14] sm:$0xf]
        %v233 = vld [vmem:[#allocation5 + $0x18] sm:$0xf]
        %v234 = vld [vmem:[#allocation5 + $0x1c] sm:$0xf]
        %v235 = vld [vmem:[%s2] sm:$0x1]
        %v237 = vlaneseq
        %v238 = vshrl.u32 %v237, 7
        %v239 = vsub.s32 0, %v238
        %v240 = vrot.slane %v235, %v239
        %v244 = vunpack.c.l.b16 %v225
        %v245 = vunpack.c.l.b16 %v226
        %v246 = vpack.c.b16 %v245, %v244
        %v255 = vunpack.c.l.b16 %v227
        %v256 = vunpack.c.l.b16 %v228
        %v257 = vunpack.c.l.b16 %v229
        %v258 = vunpack.c.l.b16 %v230
        %v259 = vunpack.c.l.b16 %v231
        %v260 = vunpack.c.l.b16 %v232
        %v261 = vunpack.c.l.b16 %v233
        %v262 = vunpack.c.l.b16 %v234
        %v263 = vpack.c.b16 %v256, %v255
        %v264 = vpack.c.b16 %v258, %v257
        %v265 = vpack.c.b16 %v260, %v259
        %v266 = vpack.c.b16 %v262, %v261
        %vm271 = vcmask 523264
        %v273 = vsel %vm271, %v246, 0
        %275 = vmatprep.subr.bf16.mxu0 0
        %276 = vmatpush1.bf16.msra.mxu0 0
        %277 = vmatprep.subr.bf16.mxu0 0
        %278 = vmatpush1.bf16.msra.mxu0 0
        %279 = vmatprep.subr.bf16.mxu0 0
        %280 = vmatpush1.bf16.msra.mxu0 0
        %281 = vmatprep.subr.bf16.mxu0 0
        %282 = vmatpush1.bf16.msra.mxu0 0
        %283 = vmatprep.subr.bf16.mxu0 0
        %284 = vmatpush1.bf16.msra.mxu0 %v266
        %285 = vmatprep.subr.bf16.mxu0 0
        %286 = vmatpush1.bf16.msra.mxu0 %v265
        %287 = vmatprep.subr.bf16.mxu0 0
        %288 = vmatpush1.bf16.msra.mxu0 %v264
        %289 = vmatprep.subr.bf16.mxu0 0
        %290 = vmatpush1.bf16.msra.mxu0 %v263
        %291 = vmatprep.subr.bf16.mxu0 0
        %292 = vmatpush2.bf16.msra.mxu0 0
        %293 = vmatprep.subr.bf16.mxu0 0
        %294 = vmatpush2.bf16.msra.mxu0 0
        %295 = vmatprep.subr.bf16.mxu0 0
        %296 = vmatpush2.bf16.msra.mxu0 0
        %297 = vmatprep.subr.bf16.mxu0 0
        %298 = vmatpush2.bf16.msra.mxu0 0
        %299 = vmatprep.subr.bf16.mxu0 0
        %300 = vmatpush2.bf16.msra.mxu0 0
        %301 = vmatprep.subr.bf16.mxu0 0
        %302 = vmatpush2.bf16.msra.mxu0 0
        %303 = vmatprep.subr.bf16.mxu0 0
        %304 = vmatpush2.bf16.msra.mxu0 0
        %305 = vmatprep.subr.bf16.mxu0 0
        %306 = vmatpush2.bf16.msra.mxu0 0
        %307 = vmatprep.mubr.bf16.mxu0 0
        %308 = vmatmul.mubr.bf16.gmra.mxu0 %v273
        %v309 = vpop.f32.mrf.mxu0
        %v310 = vadd.f32 %v240, %v309
        %v311 = vpop.f32.mrf.mxu0
        %v312 = vpop.f32.mrf.mxu0
        %v313 = vadd.f32 %v240, %v312
        %v314 = vpop.f32.mrf.mxu0
        %315 = vdwg.mxu0
        %v316 = vpack.c.bf16 %v313, %v310
        %v318 = vunpack.c.l.b16 %v316
        %v319 = vunpack.c.h.b16 %v316
        %v320 = vpack.c.b16 %v318, %v318
        %v321 = vpack.c.b16 %v319, %v319
        %vm324 = vcmask 519168
        %325 = vst.msk [vmem:[%s221] sm:$0xf] %vm324, %v320
        %326 = vst.msk [vmem:[%s221 + $0x4] sm:$0xf] %vm324, %v321
        %s327 = sand.u32 %s113, 1
        %s328 = scalar_lea.sflag [#allocation4], %s327
        %s329 = sand.u32 %s113, 1
        %s330 = smul.addr %s329, 8
        %s331 = scalar_lea.vmem [#allocation7], %s330
        // Predicated region
        $region41: #{tpu_custom_call.1} parent=31 // pred_check
          %p332 = pneg %p123
        $region42: #{tpu_custom_call.1} parent=31 // pred_check_branch
          %334 = sbr.rel (%p332) target = $region44
        $region43: #{tpu_custom_call.1} parent=31 // pred_region
          %s335 = smul.u32 2, %s26
          %s337 = ssub.s32 128, 128
          %338 = vsyncadd %s328, %s337
          %s339 = smul.addr %s25, 2
          %s340 = sadd.s32 %s335, %s339
          %s341 = smul.addr %s340, 64
          %s342 = scalar_lea.hbm %s3, %s341
          %s343 = sshll.u32 %s331, 4
          %s344 = int_to_ptr.vmem [resolvable:$true] %s343
          %349 = dma.vmem_to_hbm [thread:$0]  %s344, 128, %s342, %s328, 64, 64, 4
        $region44: #{tpu_custom_call.1} parent=31 // pred_fallthru
          _
      $region32: #{tpu_custom_call.1} parent=5 // pred_fallthru
        _
      %p350 = scmp.le.s32.totalorder 2, %s16
      // Predicated region
      $region45: #{tpu_custom_call.1} parent=5 // pred_check
        %p351 = pneg %p350
      $region46: #{tpu_custom_call.1} parent=5 // pred_check_branch
        %353 = sbr.rel (%p351) target = $region48
      $region47: #{tpu_custom_call.1} parent=5 // pred_region
        %s354 = ssub.s32 %s16, 2
        // Predicated region
        $region49: #{tpu_custom_call.1} parent=47 // pred_check
          %p355 = pneg %p129
        $region50: #{tpu_custom_call.1} parent=47 // pred_check_branch
          %357 = sbr.rel (%p355) target = $region52
        $region51: #{tpu_custom_call.1} parent=47 // pred_region
          %s358 = sand.u32 %s114, 1
          %s359 = scalar_lea.sflag [#allocation4], %s358
          %s360 = sand.u32 %s114, 1
          %s361 = smul.addr %s360, 8
          %s362 = scalar_lea.vmem [#allocation7], %s361
          %363 = dma.done %s359, 128
        $region52: #{tpu_custom_call.1} parent=47 // pred_fallthru
          _
      $region48: #{tpu_custom_call.1} parent=5 // pred_fallthru
        _
    $region6: #{tpu_custom_call.1} parent=1 // loop_footer
      %s20 = sadd.s32 1, %s16
    $region7: #{tpu_custom_call.1} parent=1 // loop_footer_branch
      %15 = sbr.rel target = $region3
    $region8: #{tpu_custom_call.1} parent=1 // loop_exit
      _
    %364 = vsyncpa [#allocation3], 1
    %s365 = scalar_lea.sflag [#allocation3], 1
    %366 = vsyncpa %s365, 1
    %367 = vsyncpa [#allocation6], 1
    %368 = vsyncpa [#allocation4], 1
    %s369 = scalar_lea.sflag [#allocation4], 1
    %370 = vsyncpa %s369, 1

</llo_original>
